<compile_context>
chip_gen: v5e
topology: v5e:2x2
jax: 0.10.0
libtpu: 0.0.40
codegen_flags: <defaults>
</compile_context>

<pallas_src>
import functools
import math

import jax
import jax.numpy as jnp
from jax.experimental import pallas as pl
from jax.experimental.pallas import tpu as pltpu


# ---------------------------------------------------------------------------
# Kernels
# ---------------------------------------------------------------------------
def pe_add_kernel(x_ref, pe_ref, o_ref):
    # x_ref: (tile_b, tile_c), pe_ref: (1, tile_c) -> broadcast add over rows.
    o_ref[...] = (x_ref[...] + pe_ref[...]).astype(o_ref.dtype)


def pe_add_dropout_kernel(x_ref, pe_ref, bits_ref, o_ref, *, threshold, scale):
    # Inverted dropout fused into the add.  bits_ref holds uint32 random bits.
    y = x_ref[...] + pe_ref[...]
    keep = bits_ref[...] >= jnp.uint32(threshold)
    # Stay in x.dtype (no f32 upcast) -> native bf16 VPU path on v6e/v7x.
    o_ref[...] = jnp.where(
        keep, y * jnp.asarray(scale, y.dtype), jnp.zeros_like(y)
    ).astype(o_ref.dtype)


# ---------------------------------------------------------------------------
# Parameter ("buffer") construction — mirrors the torch __init__
# ---------------------------------------------------------------------------
def make_pe(max_len, d_model, dtype=jnp.float32):
    # torch code initializes pe with randn but fully overwrites even/odd columns
    # with sin/cos (d_model is even), so the randn values never matter.
    position = jnp.arange(max_len, dtype=jnp.float32)[:, None]              # (L, 1)
    div_term = jnp.exp(
        jnp.arange(0, d_model, 2, dtype=jnp.float32) * -(math.log(10000.0) / d_model)
    )                                                                        # (D/2,)
    angles = position * div_term[None, :]                                    # (L, D/2)
    pe = jnp.zeros((max_len, d_model), dtype=jnp.float32)
    pe = pe.at[:, 0::2].set(jnp.sin(angles))
    pe = pe.at[:, 1::2].set(jnp.cos(angles))
    # Pre-cast once at construction so the forward never pays a per-call astype.
    return pe.astype(dtype)


# ---------------------------------------------------------------------------
# Tiling policy
# ---------------------------------------------------------------------------
def _vmem_budget():
    """(per-block byte budget, vmem_limit_bytes), generation-aware."""
    kind = ""
    try:
        kind = jax.devices()[0].device_kind.lower()
    except Exception:
        pass
    if "v7" in kind:
        # v7x: 64 MiB physical VMEM per TensorCore -> keep 4x block + pe well under it.
        return 5 * 1024 * 1024, 40 * 1024 * 1024
    return 8 * 1024 * 1024, 48 * 1024 * 1024


def _choose_tiles(B, C, itemsize, budget_bytes):
    """Pick (tile_b, tile_c) for the (B, C) lane-dense view.

    Caller guarantees C % 128 == 0.  Guarantees:
      * tile_c is a 128-multiple divisor of C, or tile_c == C,
      * tile_b is a multiple of 8 or equal to B,
      * tile_b * tile_c * itemsize <= budget_bytes.
    """
    max_elems = max(8 * 128, budget_bytes // itemsize)
    row_floor = min(B, 8)

    if C * row_floor <= max_elems:
        tile_c = C
    else:
        m = C // 128
        cap = max(1, max_elems // (128 * row_floor))   # in units of 128 lanes
        d = min(m, cap)
        while m % d != 0:
            d -= 1
        tile_c = 128 * d

    rows = max_elems // tile_c                          # >= row_floor by construction
    if rows >= B:
        tile_b = B
    else:
        tile_b = max(8, (rows // 8) * 8)
    return tile_b, tile_c


# ---------------------------------------------------------------------------
# Wrapper
# ---------------------------------------------------------------------------
def positional_encoding_forward(x, pe, *, dropout_p=0.1, training=False, seed=0,
                                min_pallas_bytes=256 * 1024):
    B, S, D = x.shape
    max_len, d_model = pe.shape
    assert d_model == D and S <= max_len

    if training and dropout_p >= 1.0:
        # nn.Dropout(p=1.0) zeroes everything in training mode.
        return jnp.zeros_like(x)

    keep_p = 1.0 - float(dropout_p)
    use_dropout = training and dropout_p > 0.0
    C = S * D
    itemsize = jnp.dtype(x.dtype).itemsize

    # --- Fast path: tiny problems (pallas dispatch overhead dominates) or a
    # --- lane-unfriendly C (would violate the (8,128) blocking rule for pe).
    if (B * C * itemsize < min_pallas_bytes) or (C % 128 != 0):
        y = x + pe[:S][None, :, :].astype(x.dtype)
        if use_dropout:
            keep = jax.random.bernoulli(jax.random.PRNGKey(seed), keep_p, y.shape)
            y = jnp.where(keep, y / keep_p, 0.0).astype(x.dtype)
        return y

    # --- Pallas path --------------------------------------------------------
    x2 = x.reshape(B, C)
    # Row-major reshape is free; first S*D columns == pe[:S] flattened.
    pe2 = pe.reshape(1, max_len * D)
    if pe2.dtype != x.dtype:
        pe2 = pe2.astype(x.dtype)   # fallback only; prefer make_pe(dtype=x.dtype)

    budget_bytes, vmem_limit = _vmem_budget()
    tile_b, tile_c = _choose_tiles(B, C, itemsize, budget_bytes)
    n_col = C // tile_c
    n_row = pl.cdiv(B, tile_b)

    # Megacore (v7x): if the whole problem is one block, split rows so both
    # TensorCores get a grid step.
    if n_col == 1 and n_row == 1 and B > 8:
        tile_b = max(8, ((pl.cdiv(B, 2) + 7) // 8) * 8)
        n_row = pl.cdiv(B, tile_b)

    if n_col == 1:
        # 1D row grid -> the sharded axis is the row axis.
        grid = (n_row,)
        semantics = ("parallel",)
        xmap = lambda ib: (ib, 0)
        pemap = lambda ib: (0, 0)
    else:
        # Rows inner so the pe block index is constant across consecutive steps
        # (pe is not re-DMA'd every iteration).
        grid = (n_col, n_row)
        semantics = ("parallel", "parallel")
        xmap = lambda jc, ib: (ib, jc)
        pemap = lambda jc, ib: (0, jc)

    x_spec = pl.BlockSpec((tile_b, tile_c), xmap)
    pe_spec = pl.BlockSpec((1, tile_c), pemap)
    out_spec = pl.BlockSpec((tile_b, tile_c), xmap)

    compiler_params = pltpu.CompilerParams(
        dimension_semantics=semantics,
        vmem_limit_bytes=vmem_limit,
    )
    out_shape = jax.ShapeDtypeStruct((B, C), x.dtype)

    if not use_dropout:
        out2 = pl.pallas_call(
            pe_add_kernel,
            out_shape=out_shape,
            grid_spec=pltpu.PrefetchScalarGridSpec(
                num_scalar_prefetch=0, grid=grid,
                in_specs=[x_spec, pe_spec], out_specs=out_spec),
            compiler_params=compiler_params,
        )(x2, pe2)
        return out2.reshape(B, S, D)

    # Training mode: dropout bits generated in the wrapper (portable on TPU and
    # interpret mode), consumed inside the fused kernel.
    bits = jax.random.bits(jax.random.PRNGKey(seed), (B, C), dtype=jnp.uint32)
    threshold = min(int(float(dropout_p) * 4294967296.0), 4294967295)
    kernel = functools.partial(pe_add_dropout_kernel,
                               threshold=threshold, scale=1.0 / keep_p)
    out2 = pl.pallas_call(
        kernel,
        out_shape=out_shape,
        grid_spec=pltpu.PrefetchScalarGridSpec(
            num_scalar_prefetch=0, grid=grid,
            in_specs=[x_spec, pe_spec, x_spec], out_specs=out_spec),
        compiler_params=compiler_params,
    )(x2, pe2, bits)
    return out2.reshape(B, S, D)


# ---------------------------------------------------------------------------
# Demo
# ---------------------------------------------------------------------------
if __name__ == "__main__":
    key = jax.random.PRNGKey(0)

    batch, seq_len, d_model = 4, 128, 64
    max_len = 512
    dropout_p = 0.1

    x = jax.random.normal(key, (batch, seq_len, d_model), dtype=jnp.float32)
    pe = make_pe(max_len, d_model, dtype=x.dtype)
    ref = x + pe[:seq_len][None, :, :]

    # Eval mode, forced through the Pallas kernel (min_pallas_bytes=0).
    out = positional_encoding_forward(
        x, pe, dropout_p=dropout_p, training=False, min_pallas_bytes=0
    )
    out = jax.block_until_ready(out)
    assert out.shape == x.shape
    assert jnp.allclose(out, ref, atol=1e-6), "eval-mode (pallas) mismatch vs reference"

    # Eval mode with the default small-problem fast path (plain XLA) — same result.
    out_fast = jax.block_until_ready(
        positional_encoding_forward(x, pe, dropout_p=dropout_p, training=False)
    )
    assert jnp.allclose(out_fast, ref, atol=1e-6), "fast-path mismatch vs reference"

    # Training mode (Pallas): every element is either 0 (dropped) or (x+pe)/(1-p).
    out_tr = positional_encoding_forward(
        x, pe, dropout_p=dropout_p, training=True, seed=1234, min_pallas_bytes=0
    )
    out_tr = jax.block_until_ready(out_tr)
    scaled = ref / (1.0 - dropout_p)
    is_dropped = jnp.isclose(out_tr, 0.0, atol=1e-6)
    is_kept = jnp.isclose(out_tr, scaled, atol=1e-4)
    assert bool(jnp.all(is_dropped | is_kept)), "training-mode dropout mismatch"
    keep_frac = float(jnp.mean(is_kept.astype(jnp.float32)))
    assert abs(keep_frac - (1.0 - dropout_p)) < 0.05, "dropout keep-rate off"

    print("KERNEL_OK")
</pallas_src>

<mosaic_0001>
module attributes {stable_mosaic.version = 11 : i64} {
  func.func @pe_add_kernel(%arg0: i32, %arg1: memref<4x8192xf32, #tpu.memory_space<vmem>>, %arg2: memref<1x8192xf32, #tpu.memory_space<vmem>>, %arg3: memref<4x8192xf32, #tpu.memory_space<vmem>>) attributes {dimension_semantics = [#tpu.dimension_semantics<parallel>], iteration_bounds = array<i64: 1>, scalar_prefetch = 0 : i64, scratch_operands = 0 : i64, tpu.core_type = #tpu.core_type<tc>, window_params = [{transform_indices = @transform_0, window_bounds = array<i64: 4, 8192>}, {transform_indices = @transform_1, window_bounds = array<i64: 1, 8192>}, {transform_indices = @transform_2, window_bounds = array<i64: 4, 8192>}]} {
    %c0 = arith.constant 0 : index
    %c0_0 = arith.constant 0 : index
    %0 = vector.load %arg1[%c0, %c0_0] : memref<4x8192xf32, #tpu.memory_space<vmem>>, vector<4x8192xf32>
    %c0_1 = arith.constant 0 : index
    %c0_2 = arith.constant 0 : index
    %1 = vector.load %arg2[%c0_1, %c0_2] : memref<1x8192xf32, #tpu.memory_space<vmem>>, vector<1x8192xf32>
    %2 = vector.broadcast %1 : vector<1x8192xf32> to vector<4x8192xf32>
    %3 = arith.addf %0, %2 : vector<4x8192xf32>
    %c0_3 = arith.constant 0 : index
    %c0_4 = arith.constant 0 : index
    %4 = vector.load %arg3[%c0_3, %c0_4] : memref<4x8192xf32, #tpu.memory_space<vmem>>, vector<4x8192xf32>
    tpu.vector_store %arg3[%c0_3, %c0_4], %3 {strides = array<i32>} : memref<4x8192xf32, #tpu.memory_space<vmem>>, vector<4x8192xf32>,
    return
  }
  func.func @transform_0(%arg0: i32) -> (i32, i32) {
    %c0_i32 = arith.constant 0 : i32
    %c0_i32_0 = arith.constant 0 : i32
    return %arg0, %c0_i32 : i32, i32
  }
  func.func @transform_1(%arg0: i32) -> (i32, i32) {
    %c0_i32 = arith.constant 0 : i32
    %c0_i32_0 = arith.constant 0 : i32
    %c0_i32_1 = arith.constant 0 : i32
    return %c0_i32, %c0_i32_0 : i32, i32
  }
  func.func @transform_2(%arg0: i32) -> (i32, i32) {
    %c0_i32 = arith.constant 0 : i32
    %c0_i32_0 = arith.constant 0 : i32
    return %arg0, %c0_i32 : i32, i32
  }
}

</mosaic_0001>

<llo_original>
// kernel: tpu_custom_call.1
$region0: #{tpu_custom_call.1}
  #allocation0 [shape = 'u32[]', space=smem, size = 0x4, offset = 0x4, fixed_abs, tag = 'smem constant byte address 0x4 - core index']
  #allocation1 [shape = 'u32[72,128]{1,0:T(1,128)}', space=vmem, size = 0x9000, scoped, tag = 'internal scratch']
  %s0 = inlined_call_operand.hbm [shape: f32[4,8192], index: 0, kind: input, shape index: {}]
  %s1 = inlined_call_operand.hbm [shape: f32[1,32768], index: 1, kind: input, shape index: {}]
  %s2 = inlined_call_operand.hbm [shape: f32[4,8192], index: 2, kind: output, shape index: {}]
  %s3 = sld [smem:[#allocation0]]
  $region26: #{tpu_custom_call.1} parent=0
    _
  %s5 = ssub.s32 1, %s3
  %s6 = scalar_select 0, %s5, %s3
  $region1: #{tpu_custom_call.1} parent=0
    #allocation2 [shape = 'u8[131072]{0}', space=vmem, size = 0x20000, scoped, tag = 'input window, operand 0, single buffered']
    #allocation3 [shape = 's32[1]{0}', space=sflag, size = 0x4, scoped, tag = 'scoped memory for tpu_custom_call.1']
    #allocation4 [shape = 's32[1]{0}', space=sflag, size = 0x4, scoped, tag = 'scoped memory for tpu_custom_call.1']
    #allocation5 [shape = 'u8[32768]{0}', space=vmem, size = 0x8000, scoped, tag = 'input window, operand 1, single buffered']
    #allocation6 [shape = 's32[1]{0}', space=sflag, size = 0x4, scoped, tag = 'scoped memory for tpu_custom_call.1']
    #allocation7 [shape = 'u8[131072]{0}', space=vmem, size = 0x20000, scoped, tag = 'output window, operand 0, single buffered']
    %7 = vsyncpa [#allocation3], 0
    %8 = vsyncpa [#allocation6], 0
    %9 = vsyncpa [#allocation4], 0
    // Predicated region
    $region2: #{tpu_custom_call.1} parent=1 // pred_check
      _
    $region3: #{tpu_custom_call.1} parent=1 // pred_check_branch
      %11 = sbr.rel (0) target = $region5
    $region4: #{tpu_custom_call.1} parent=1 // pred_region
      %13 = vsyncadd [#allocation3], 0
      %s15 = sshll.u32 %s0, 4
      %s16 = int_to_ptr.hbm [resolvable:$true] %s15
      %s17 = sshll.u32 [#allocation2], 4
      %s18 = int_to_ptr.vmem [resolvable:$true] %s17
      %20 = dma.hbm_to_vmem [thread:$0]  %s16, 4096, %s18, [#allocation3]
    $region5: #{tpu_custom_call.1} parent=1 // pred_fallthru
      _
    // Predicated region
    $region6: #{tpu_custom_call.1} parent=1 // pred_check
      _
    $region7: #{tpu_custom_call.1} parent=1 // pred_check_branch
      %22 = sbr.rel (0) target = $region9
    $region8: #{tpu_custom_call.1} parent=1 // pred_region
      %24 = vsyncadd [#allocation6], 0
      %s26 = sshll.u32 %s1, 4
      %s27 = int_to_ptr.hbm [resolvable:$true] %s26
      %s28 = sshll.u32 [#allocation5], 4
      %s29 = int_to_ptr.vmem [resolvable:$true] %s28
      %31 = dma.hbm_to_vmem [thread:$0]  %s27, 1024, %s29, [#allocation6]
    $region9: #{tpu_custom_call.1} parent=1 // pred_fallthru
      _
    // Predicated region
    $region10: #{tpu_custom_call.1} parent=1 // pred_check
      _
    $region11: #{tpu_custom_call.1} parent=1 // pred_check_branch
      %33 = sbr.rel (0) target = $region13
    $region12: #{tpu_custom_call.1} parent=1 // pred_region
      %35 = dma.done [#allocation3], 4096
    $region13: #{tpu_custom_call.1} parent=1 // pred_fallthru
      _
    // Predicated region
    $region14: #{tpu_custom_call.1} parent=1 // pred_check
      _
    $region15: #{tpu_custom_call.1} parent=1 // pred_check_branch
      %37 = sbr.rel (0) target = $region17
    $region16: #{tpu_custom_call.1} parent=1 // pred_region
      %39 = dma.done [#allocation6], 1024
    $region17: #{tpu_custom_call.1} parent=1 // pred_fallthru
      _
    %v40 = vld [vmem:[#allocation2] sm:$0xff]
    %v41 = vld [vmem:[#allocation2 + $0x8] sm:$0xff]
    %v42 = vld [vmem:[#allocation2 + $0x10] sm:$0xff]
    %v43 = vld [vmem:[#allocation2 + $0x18] sm:$0xff]
    %v44 = vld [vmem:[#allocation2 + $0x20] sm:$0xff]
    %v45 = vld [vmem:[#allocation2 + $0x28] sm:$0xff]
    %v46 = vld [vmem:[#allocation2 + $0x30] sm:$0xff]
    %v47 = vld [vmem:[#allocation2 + $0x38] sm:$0xff]
    %v48 = vld [vmem:[#allocation2 + $0x40] sm:$0xff]
    %v49 = vld [vmem:[#allocation2 + $0x48] sm:$0xff]
    %v50 = vld [vmem:[#allocation2 + $0x50] sm:$0xff]
    %v51 = vld [vmem:[#allocation2 + $0x58] sm:$0xff]
    %v52 = vld [vmem:[#allocation2 + $0x60] sm:$0xff]
    %v53 = vld [vmem:[#allocation2 + $0x68] sm:$0xff]
    %v54 = vld [vmem:[#allocation2 + $0x70] sm:$0xff]
    %v55 = vld [vmem:[#allocation2 + $0x78] sm:$0xff]
    %v56 = vld [vmem:[#allocation2 + $0x80] sm:$0xff]
    %v57 = vld [vmem:[#allocation2 + $0x88] sm:$0xff]
    %v58 = vld [vmem:[#allocation2 + $0x90] sm:$0xff]
    %v59 = vld [vmem:[#allocation2 + $0x98] sm:$0xff]
    %v60 = vld [vmem:[#allocation2 + $0xa0] sm:$0xff]
    %v61 = vld [vmem:[#allocation2 + $0xa8] sm:$0xff]
    %v62 = vld [vmem:[#allocation2 + $0xb0] sm:$0xff]
    %v63 = vld [vmem:[#allocation2 + $0xb8] sm:$0xff]
    %v64 = vld [vmem:[#allocation2 + $0xc0] sm:$0xff]
    %v65 = vld [vmem:[#allocation2 + $0xc8] sm:$0xff]
    %v66 = vld [vmem:[#allocation2 + $0xd0] sm:$0xff]
    %v67 = vld [vmem:[#allocation2 + $0xd8] sm:$0xff]
    %v68 = vld [vmem:[#allocation2 + $0xe0] sm:$0xff]
    %v69 = vld [vmem:[#allocation2 + $0xe8] sm:$0xff]
    %v70 = vld [vmem:[#allocation2 + $0xf0] sm:$0xff]
    %v71 = vld [vmem:[#allocation2 + $0xf8] sm:$0xff]
    %v72 = vld [vmem:[#allocation5] sm:$0xff]
    %v73 = vld [vmem:[#allocation5 + $0x8] sm:$0xff]
    %v74 = vld [vmem:[#allocation5 + $0x10] sm:$0xff]
    %v75 = vld [vmem:[#allocation5 + $0x18] sm:$0xff]
    %v76 = vld [vmem:[#allocation5 + $0x20] sm:$0xff]
    %v77 = vld [vmem:[#allocation5 + $0x28] sm:$0xff]
    %v78 = vld [vmem:[#allocation5 + $0x30] sm:$0xff]
    %v79 = vld [vmem:[#allocation5 + $0x38] sm:$0xff]
    %v88 = vperm.slane %v72, 0
    %v89 = vperm.slane %v72, 1
    %v90 = vperm.slane %v72, 2
    %v91 = vperm.slane %v72, 3
    %v92 = vperm.slane %v72, 4
    %v93 = vperm.slane %v72, 5
    %v94 = vperm.slane %v72, 6
    %v95 = vperm.slane %v72, 7
    %v96 = vperm.slane %v73, 0
    %v97 = vperm.slane %v73, 1
    %v98 = vperm.slane %v73, 2
    %v99 = vperm.slane %v73, 3
    %v100 = vperm.slane %v73, 4
    %v101 = vperm.slane %v73, 5
    %v102 = vperm.slane %v73, 6
    %v103 = vperm.slane %v73, 7
    %v104 = vperm.slane %v74, 0
    %v105 = vperm.slane %v74, 1
    %v106 = vperm.slane %v74, 2
    %v107 = vperm.slane %v74, 3
    %v108 = vperm.slane %v74, 4
    %v109 = vperm.slane %v74, 5
    %v110 = vperm.slane %v74, 6
    %v111 = vperm.slane %v74, 7
    %v112 = vperm.slane %v75, 0
    %v113 = vperm.slane %v75, 1
    %v114 = vperm.slane %v75, 2
    %v115 = vperm.slane %v75, 3
    %v116 = vperm.slane %v75, 4
    %v117 = vperm.slane %v75, 5
    %v118 = vperm.slane %v75, 6
    %v119 = vperm.slane %v75, 7
    %v120 = vperm.slane %v76, 0
    %v121 = vperm.slane %v76, 1
    %v122 = vperm.slane %v76, 2
    %v123 = vperm.slane %v76, 3
    %v124 = vperm.slane %v76, 4
    %v125 = vperm.slane %v76, 5
    %v126 = vperm.slane %v76, 6
    %v127 = vperm.slane %v76, 7
    %v128 = vperm.slane %v77, 0
    %v129 = vperm.slane %v77, 1
    %v130 = vperm.slane %v77, 2
    %v131 = vperm.slane %v77, 3
    %v132 = vperm.slane %v77, 4
    %v133 = vperm.slane %v77, 5
    %v134 = vperm.slane %v77, 6
    %v135 = vperm.slane %v77, 7
    %v136 = vperm.slane %v78, 0
    %v137 = vperm.slane %v78, 1
    %v138 = vperm.slane %v78, 2
    %v139 = vperm.slane %v78, 3
    %v140 = vperm.slane %v78, 4
    %v141 = vperm.slane %v78, 5
    %v142 = vperm.slane %v78, 6
    %v143 = vperm.slane %v78, 7
    %v144 = vperm.slane %v79, 0
    %v145 = vperm.slane %v79, 1
    %v146 = vperm.slane %v79, 2
    %v147 = vperm.slane %v79, 3
    %v148 = vperm.slane %v79, 4
    %v149 = vperm.slane %v79, 5
    %v150 = vperm.slane %v79, 6
    %v151 = vperm.slane %v79, 7
    %v152 = vrot.slane %v89, 4
    %v153 = vrot.slane %v91, 4
    %v154 = vrot.slane %v93, 4
    %v155 = vrot.slane %v95, 4
    %v156 = vrot.slane %v97, 4
    %v157 = vrot.slane %v99, 4
    %v158 = vrot.slane %v101, 4
    %v159 = vrot.slane %v103, 4
    %v160 = vrot.slane %v105, 4
    %v161 = vrot.slane %v107, 4
    %v162 = vrot.slane %v109, 4
    %v163 = vrot.slane %v111, 4
    %v164 = vrot.slane %v113, 4
    %v165 = vrot.slane %v115, 4
    %v166 = vrot.slane %v117, 4
    %v167 = vrot.slane %v119, 4
    %v168 = vrot.slane %v121, 4
    %v169 = vrot.slane %v123, 4
    %v170 = vrot.slane %v125, 4
    %v171 = vrot.slane %v127, 4
    %v172 = vrot.slane %v129, 4
    %v173 = vrot.slane %v131, 4
    %v174 = vrot.slane %v133, 4
    %v175 = vrot.slane %v135, 4
    %v176 = vrot.slane %v137, 4
    %v177 = vrot.slane %v139, 4
    %v178 = vrot.slane %v141, 4
    %v179 = vrot.slane %v143, 4
    %v180 = vrot.slane %v145, 4
    %v181 = vrot.slane %v147, 4
    %v182 = vrot.slane %v149, 4
    %v183 = vrot.slane %v151, 4
    %vm184 = vcmask 1043456
    %v185 = vsel %vm184, %v88, %v152
    %v186 = vsel %vm184, %v90, %v153
    %v187 = vsel %vm184, %v92, %v154
    %v188 = vsel %vm184, %v94, %v155
    %v189 = vsel %vm184, %v96, %v156
    %v190 = vsel %vm184, %v98, %v157
    %v191 = vsel %vm184, %v100, %v158
    %v192 = vsel %vm184, %v102, %v159
    %v193 = vsel %vm184, %v104, %v160
    %v194 = vsel %vm184, %v106, %v161
    %v195 = vsel %vm184, %v108, %v162
    %v196 = vsel %vm184, %v110, %v163
    %v197 = vsel %vm184, %v112, %v164
    %v198 = vsel %vm184, %v114, %v165
    %v199 = vsel %vm184, %v116, %v166
    %v200 = vsel %vm184, %v118, %v167
    %v201 = vsel %vm184, %v120, %v168
    %v202 = vsel %vm184, %v122, %v169
    %v203 = vsel %vm184, %v124, %v170
    %v204 = vsel %vm184, %v126, %v171
    %v205 = vsel %vm184, %v128, %v172
    %v206 = vsel %vm184, %v130, %v173
    %v207 = vsel %vm184, %v132, %v174
    %v208 = vsel %vm184, %v134, %v175
    %v209 = vsel %vm184, %v136, %v176
    %v210 = vsel %vm184, %v138, %v177
    %v211 = vsel %vm184, %v140, %v178
    %v212 = vsel %vm184, %v142, %v179
    %v213 = vsel %vm184, %v144, %v180
    %v214 = vsel %vm184, %v146, %v181
    %v215 = vsel %vm184, %v148, %v182
    %v216 = vsel %vm184, %v150, %v183
    %v249 = vadd.f32 %v40, %v185
    %v250 = vadd.f32 %v41, %v186
    %v251 = vadd.f32 %v42, %v187
    %v252 = vadd.f32 %v43, %v188
    %v253 = vadd.f32 %v44, %v189
    %v254 = vadd.f32 %v45, %v190
    %v255 = vadd.f32 %v46, %v191
    %v256 = vadd.f32 %v47, %v192
    %v257 = vadd.f32 %v48, %v193
    %v258 = vadd.f32 %v49, %v194
    %v259 = vadd.f32 %v50, %v195
    %v260 = vadd.f32 %v51, %v196
    %v261 = vadd.f32 %v52, %v197
    %v262 = vadd.f32 %v53, %v198
    %v263 = vadd.f32 %v54, %v199
    %v264 = vadd.f32 %v55, %v200
    %v265 = vadd.f32 %v56, %v201
    %v266 = vadd.f32 %v57, %v202
    %v267 = vadd.f32 %v58, %v203
    %v268 = vadd.f32 %v59, %v204
    %v269 = vadd.f32 %v60, %v205
    %v270 = vadd.f32 %v61, %v206
    %v271 = vadd.f32 %v62, %v207
    %v272 = vadd.f32 %v63, %v208
    %v273 = vadd.f32 %v64, %v209
    %v274 = vadd.f32 %v65, %v210
    %v275 = vadd.f32 %v66, %v211
    %v276 = vadd.f32 %v67, %v212
    %v277 = vadd.f32 %v68, %v213
    %v278 = vadd.f32 %v69, %v214
    %v279 = vadd.f32 %v70, %v215
    %v280 = vadd.f32 %v71, %v216
    %281 = vst [vmem:[#allocation7] sm:$0xff] %v249
    %282 = vst [vmem:[#allocation7 + $0x8] sm:$0xff] %v250
    %283 = vst [vmem:[#allocation7 + $0x10] sm:$0xff] %v251
    %284 = vst [vmem:[#allocation7 + $0x18] sm:$0xff] %v252
    %285 = vst [vmem:[#allocation7 + $0x20] sm:$0xff] %v253
    %286 = vst [vmem:[#allocation7 + $0x28] sm:$0xff] %v254
    %287 = vst [vmem:[#allocation7 + $0x30] sm:$0xff] %v255
    %288 = vst [vmem:[#allocation7 + $0x38] sm:$0xff] %v256
    %289 = vst [vmem:[#allocation7 + $0x40] sm:$0xff] %v257
    %290 = vst [vmem:[#allocation7 + $0x48] sm:$0xff] %v258
    %291 = vst [vmem:[#allocation7 + $0x50] sm:$0xff] %v259
    %292 = vst [vmem:[#allocation7 + $0x58] sm:$0xff] %v260
    %293 = vst [vmem:[#allocation7 + $0x60] sm:$0xff] %v261
    %294 = vst [vmem:[#allocation7 + $0x68] sm:$0xff] %v262
    %295 = vst [vmem:[#allocation7 + $0x70] sm:$0xff] %v263
    %296 = vst [vmem:[#allocation7 + $0x78] sm:$0xff] %v264
    %297 = vst [vmem:[#allocation7 + $0x80] sm:$0xff] %v265
    %298 = vst [vmem:[#allocation7 + $0x88] sm:$0xff] %v266
    %299 = vst [vmem:[#allocation7 + $0x90] sm:$0xff] %v267
    %300 = vst [vmem:[#allocation7 + $0x98] sm:$0xff] %v268
    %301 = vst [vmem:[#allocation7 + $0xa0] sm:$0xff] %v269
    %302 = vst [vmem:[#allocation7 + $0xa8] sm:$0xff] %v270
    %303 = vst [vmem:[#allocation7 + $0xb0] sm:$0xff] %v271
    %304 = vst [vmem:[#allocation7 + $0xb8] sm:$0xff] %v272
    %305 = vst [vmem:[#allocation7 + $0xc0] sm:$0xff] %v273
    %306 = vst [vmem:[#allocation7 + $0xc8] sm:$0xff] %v274
    %307 = vst [vmem:[#allocation7 + $0xd0] sm:$0xff] %v275
    %308 = vst [vmem:[#allocation7 + $0xd8] sm:$0xff] %v276
    %309 = vst [vmem:[#allocation7 + $0xe0] sm:$0xff] %v277
    %310 = vst [vmem:[#allocation7 + $0xe8] sm:$0xff] %v278
    %311 = vst [vmem:[#allocation7 + $0xf0] sm:$0xff] %v279
    %312 = vst [vmem:[#allocation7 + $0xf8] sm:$0xff] %v280
    // Predicated region
    $region18: #{tpu_custom_call.1} parent=1 // pred_check
      _
    $region19: #{tpu_custom_call.1} parent=1 // pred_check_branch
      %314 = sbr.rel (0) target = $region21
    $region20: #{tpu_custom_call.1} parent=1 // pred_region
      %316 = vsyncadd [#allocation4], 0
      %s318 = sshll.u32 [#allocation7], 4
      %s319 = int_to_ptr.vmem [resolvable:$true] %s318
      %s320 = sshll.u32 %s2, 4
      %s321 = int_to_ptr.hbm [resolvable:$true] %s320
      %323 = dma.vmem_to_hbm [thread:$0]  %s319, 4096, %s321, [#allocation4]
    $region21: #{tpu_custom_call.1} parent=1 // pred_fallthru
      _
    // Predicated region
    $region22: #{tpu_custom_call.1} parent=1 // pred_check
      _
    $region23: #{tpu_custom_call.1} parent=1 // pred_check_branch
      %325 = sbr.rel (0) target = $region25
    $region24: #{tpu_custom_call.1} parent=1 // pred_region
      %327 = dma.done [#allocation4], 4096
    $region25: #{tpu_custom_call.1} parent=1 // pred_fallthru
      _
    %328 = vsyncpa [#allocation3], 1
    %329 = vsyncpa [#allocation6], 1
    %330 = vsyncpa [#allocation4], 1

</llo_original>
